<compile_context>
chip_gen: v7x
topology: tpu7x:2x2x1
jax: 0.10.0
libtpu: 0.0.40
codegen_flags: <defaults>
</compile_context>

<pallas_src>
import jax
import jax.numpy as jnp
from jax import lax
from jax.experimental import pallas as pl
from jax.experimental.pallas import tpu as pltpu


def _round_up(x: int, m: int) -> int:
    return ((int(x) + m - 1) // m) * m


def _vmem_limit_bytes() -> int:
    """Generation-aware scoped-VMEM limit (leave ~half of physical VMEM free)."""
    cap = None
    try:
        cap = pltpu.get_tpu_info().vmem_capacity_bytes
    except Exception:
        cap = None
    if cap is None:
        cap = 64 * 1024 * 1024  # conservative default (v7x-sized)
    # v5e / v6e: 128 MiB physical -> 64 MiB scoped; v7x: 64 MiB -> 32 MiB scoped.
    return 64 * 1024 * 1024 if cap >= 96 * 1024 * 1024 else 32 * 1024 * 1024


def _choose_tile_rows(n: int, c: int, itemsize: int, vmem_limit: int,
                      max_rows: int = 1024, min_tiles: int = 8) -> int:
    """Largest batch tile whose double-buffered inputs + f32 temporaries fit."""
    c_pad = _round_up(max(int(c), 1), 128)          # lane-padded class dim
    sublane = max(8, 32 // max(int(itemsize), 1))   # 8 rows f32, 16 rows bf16
    # 3 inputs x 2 pipeline buffers at the input dtype, plus ~4 tile-sized f32
    # temporaries (upcast / z / exp(z) / tgt*z) living in compiler scratch.
    per_row_bytes = 3 * 2 * itemsize * c_pad + 4 * 4 * c_pad
    budget = int(vmem_limit * 0.75)
    tn = budget // per_row_bytes
    tn = max(sublane, min(int(tn), max_rows))
    tn = (tn // sublane) * sublane
    # Keep at least `min_tiles` grid steps when the batch allows, so the
    # "parallel" axis can split across v7x's two TensorCores and the DMA
    # pipeline has work to overlap.
    cap = _round_up(max(1, -(-int(n) // min_tiles)), sublane)
    return max(sublane, min(tn, cap))


def _make_combined_loss_kernel(n_rows: int, tile_rows: int):
    """n_rows / tile_rows are static; mask the ragged tail only when needed."""
    mask_tail = (n_rows % tile_rows) != 0

    def kernel(alpha_ref, true_ref, teacher_ref, student_ref, out_ref):
        alpha = alpha_ref[0, 0]

        if mask_tail:
            valid = n_rows - pl.program_id(0) * tile_rows         # scalar
            row_ids = lax.broadcasted_iota(jnp.int32, (tile_rows, 1), 0)
            row_mask = row_ids < valid                            # (TN, 1)
        else:
            row_mask = None

        def load_f32(ref):
            x = ref[...].astype(jnp.float32)                      # (TN, C)
            if row_mask is not None:
                # Zero out garbage rows of the padded last block: zero targets
                # and zero logits give an exactly-zero, finite contribution.
                x = jnp.where(row_mask, x, 0.0)
            return x

        tgt = load_f32(student_ref)                               # soft targets
        s_t = jnp.sum(tgt, axis=-1, keepdims=True)                # shared by both CE terms

        def ce_partial_sum(logits_ref):
            x = load_f32(logits_ref)
            m = jnp.max(x, axis=-1, keepdims=True)
            z = x - m
            lse = jnp.log(jnp.sum(jnp.exp(z), axis=-1, keepdims=True))   # (TN, 1)
            # -sum_c tgt*(z - lse) == lse*sum_c(tgt) - sum_c(tgt*z)
            per_row = lse * s_t - jnp.sum(tgt * z, axis=-1, keepdims=True)
            return jnp.sum(per_row)                               # tile-local scalar

        p1 = ce_partial_sum(true_ref)       # CE(input=true_labels,    target=student)
        p2 = ce_partial_sum(teacher_ref)    # CE(input=teacher_labels, target=student)
        partial = alpha * p1 + (1.0 - alpha) * p2

        # Write the partial only at (0, 0, 0) of this tile's private output
        # block (rest zeros) so the wrapper can sum the whole array directly.
        sub = lax.broadcasted_iota(jnp.int32, out_ref.shape, 1)
        lane = lax.broadcasted_iota(jnp.int32, out_ref.shape, 2)
        out_ref[...] = jnp.where((sub == 0) & (lane == 0), partial, 0.0)

    return kernel


def combined_loss(student_labels, teacher_labels, true_labels,
                  alpha: float = 0.1, tile_rows: int | None = None):
    """Pallas-backed combined distillation loss.

    Args (matching the PyTorch forward's argument order):
      student_labels: (N, C) float — soft targets for both CE terms.
      teacher_labels: (N, C) float — logits of the second CE term.
      true_labels:    (N, C) float — logits of the first CE term.
    Returns:
      scalar float32 loss.

    Caller contract: bf16 inputs are preferred (the kernel upcasts to f32
    internally), and C should ideally be a multiple of 128 for full lane
    utilization. alpha is a runtime scalar (no recompile per value).
    """
    n, c = student_labels.shape
    assert teacher_labels.shape == (n, c) and true_labels.shape == (n, c)

    itemsize = max(jnp.dtype(true_labels.dtype).itemsize,
                   jnp.dtype(teacher_labels.dtype).itemsize,
                   jnp.dtype(student_labels.dtype).itemsize)

    vmem_limit = _vmem_limit_bytes()
    if tile_rows is None:
        tn = _choose_tile_rows(n, c, itemsize, vmem_limit)
    else:
        tn = int(tile_rows)
    assert tn % 8 == 0 and tn > 0, "tile_rows must be a positive multiple of 8"

    num_tiles = pl.cdiv(n, tn)
    kernel = _make_combined_loss_kernel(n, tn)
    alpha_arr = jnp.full((1, 1), alpha, dtype=jnp.float32)

    partials = pl.pallas_call(
        kernel,
        out_shape=jax.ShapeDtypeStruct((num_tiles, 8, 128), jnp.float32),
        grid=(num_tiles,),
        in_specs=[
            pl.BlockSpec(memory_space=pltpu.MemorySpace.SMEM),   # alpha scalar
            pl.BlockSpec((tn, c), lambda i: (i, 0)),             # true_labels    (CE-1 logits)
            pl.BlockSpec((tn, c), lambda i: (i, 0)),             # teacher_labels (CE-2 logits)
            pl.BlockSpec((tn, c), lambda i: (i, 0)),             # student_labels (soft targets)
        ],
        out_specs=pl.BlockSpec((1, 8, 128), lambda i: (i, 0, 0)),
        compiler_params=pltpu.CompilerParams(
            dimension_semantics=("parallel",),
            vmem_limit_bytes=vmem_limit,
        ),
    )(alpha_arr, true_labels, teacher_labels, student_labels)

    # 'mean' reduction over the *true* batch size (masked tail contributes 0).
    return jnp.sum(partials) / jnp.float32(n)


def _reference_combined_loss(student, teacher, true, alpha=0.1):
    # Pure-JAX reference of PyTorch CrossEntropyLoss with probability targets.
    def ce(logits, tgt):
        logp = jax.nn.log_softmax(logits.astype(jnp.float32), axis=-1)
        return jnp.mean(-jnp.sum(tgt.astype(jnp.float32) * logp, axis=-1))
    return alpha * ce(true, student) + (1.0 - alpha) * ce(teacher, student)


if __name__ == "__main__":
    key = jax.random.PRNGKey(0)
    k1, k2, k3, k4, k5, k6, k7, k8, k9 = jax.random.split(key, 9)

    # 1) Tiny single-tile f32 case (batch of class scores).
    N, C = 8, 32
    student = jax.nn.softmax(jax.random.normal(k1, (N, C), jnp.float32), axis=-1)
    teacher = jax.random.normal(k2, (N, C), jnp.float32)
    true = jax.random.normal(k3, (N, C), jnp.float32)
    loss = combined_loss(student, teacher, true, alpha=0.1)
    jax.block_until_ready(loss)
    ref = _reference_combined_loss(student, teacher, true, 0.1)
    assert jnp.allclose(loss, ref, rtol=1e-5, atol=1e-4), (loss, ref)

    # 2) Multi-tile ragged batch: exercises in-kernel tail masking (no jnp.pad).
    N2, C2 = 200, 96
    student2 = jax.nn.softmax(jax.random.normal(k4, (N2, C2), jnp.float32), axis=-1)
    teacher2 = jax.random.normal(k5, (N2, C2), jnp.float32)
    true2 = jax.random.normal(k6, (N2, C2), jnp.float32)
    loss2 = combined_loss(student2, teacher2, true2, alpha=0.3, tile_rows=64)
    jax.block_until_ready(loss2)
    ref2 = _reference_combined_loss(student2, teacher2, true2, 0.3)
    assert jnp.allclose(loss2, ref2, rtol=1e-5, atol=1e-4), (loss2, ref2)

    # 3) bf16 streaming path (dtype-aware tile sizing, f32 accumulation in-kernel).
    N3, C3 = 48, 160
    student3 = jax.nn.softmax(jax.random.normal(k7, (N3, C3), jnp.float32),
                              axis=-1).astype(jnp.bfloat16)
    teacher3 = jax.random.normal(k8, (N3, C3), jnp.float32).astype(jnp.bfloat16)
    true3 = jax.random.normal(k9, (N3, C3), jnp.float32).astype(jnp.bfloat16)
    loss3 = combined_loss(student3, teacher3, true3, alpha=0.5)
    jax.block_until_ready(loss3)
    ref3 = _reference_combined_loss(student3, teacher3, true3, 0.5)
    assert jnp.allclose(loss3, ref3, rtol=1e-4, atol=1e-3), (loss3, ref3)

    print("KERNEL_OK")
</pallas_src>

<mosaic_0001>
module attributes {stable_mosaic.version = 11 : i64} {
  func.func @kernel(%arg0: i32, %arg1: memref<1x1xf32, #tpu.memory_space<smem>>, %arg2: memref<8x32xf32, #tpu.memory_space<vmem>>, %arg3: memref<8x32xf32, #tpu.memory_space<vmem>>, %arg4: memref<8x32xf32, #tpu.memory_space<vmem>>, %arg5: memref<1x8x128xf32, #tpu.memory_space<vmem>>) attributes {dimension_semantics = [#tpu.dimension_semantics<parallel>], iteration_bounds = array<i64: 1>, scalar_prefetch = 0 : i64, scratch_operands = 0 : i64, tpu.core_type = #tpu.core_type<tc>, window_params = [{transform_indices = @transform_0, window_bounds = array<i64: 1, 1>}, {transform_indices = @transform_1, window_bounds = array<i64: 8, 32>}, {transform_indices = @transform_2, window_bounds = array<i64: 8, 32>}, {transform_indices = @transform_3, window_bounds = array<i64: 8, 32>}, {transform_indices = @transform_4, window_bounds = array<i64: 1, 8, 128>}]} {
    %c0 = arith.constant 0 : index
    %c0_0 = arith.constant 0 : index
    %0 = memref.load %arg1[%c0, %c0_0] : memref<1x1xf32, #tpu.memory_space<smem>>
    %c0_1 = arith.constant 0 : index
    %c0_2 = arith.constant 0 : index
    %1 = vector.load %arg4[%c0_1, %c0_2] : memref<8x32xf32, #tpu.memory_space<vmem>>, vector<8x32xf32>
    %cst = arith.constant dense<0.000000e+00> : vector<8xf32>
    %2 = vector.multi_reduction <add>, %1, %cst [1] : vector<8x32xf32> to vector<8xf32>
    %3 = vector.shape_cast %2 : vector<8xf32> to vector<8x1xf32>
    %c0_3 = arith.constant 0 : index
    %c0_4 = arith.constant 0 : index
    %4 = vector.load %arg2[%c0_3, %c0_4] : memref<8x32xf32, #tpu.memory_space<vmem>>, vector<8x32xf32>
    %cst_5 = arith.constant dense<0xFF800000> : vector<8xf32>
    %5 = vector.multi_reduction <maximumf>, %4, %cst_5 [1] : vector<8x32xf32> to vector<8xf32>
    %6 = vector.shape_cast %5 : vector<8xf32> to vector<8x1xf32>
    %7 = vector.broadcast %6 : vector<8x1xf32> to vector<8x32xf32>
    %8 = arith.subf %4, %7 : vector<8x32xf32>
    %9 = math.exp %8 : vector<8x32xf32>
    %cst_6 = arith.constant dense<0.000000e+00> : vector<8xf32>
    %10 = vector.multi_reduction <add>, %9, %cst_6 [1] : vector<8x32xf32> to vector<8xf32>
    %11 = vector.shape_cast %10 : vector<8xf32> to vector<8x1xf32>
    %12 = math.log %11 : vector<8x1xf32>
    %13 = arith.mulf %12, %3 : vector<8x1xf32>
    %14 = arith.mulf %1, %8 : vector<8x32xf32>
    %cst_7 = arith.constant dense<0.000000e+00> : vector<8xf32>
    %15 = vector.multi_reduction <add>, %14, %cst_7 [1] : vector<8x32xf32> to vector<8xf32>
    %16 = vector.shape_cast %15 : vector<8xf32> to vector<8x1xf32>
    %17 = arith.subf %13, %16 : vector<8x1xf32>
    %18 = vector.shape_cast %17 : vector<8x1xf32> to vector<1x8x1xf32>
    %cst_8 = arith.constant dense<0.000000e+00> : vector<1xf32>
    %19 = vector.multi_reduction <add>, %18, %cst_8 [1, 2] : vector<1x8x1xf32> to vector<1xf32>
    %20 = vector.shape_cast %19 : vector<1xf32> to vector<1x1x1xf32>
    %21 = vector.extract %20[0, 0, 0] : f32 from vector<1x1x1xf32>
    %c0_9 = arith.constant 0 : index
    %c0_10 = arith.constant 0 : index
    %22 = vector.load %arg3[%c0_9, %c0_10] : memref<8x32xf32, #tpu.memory_space<vmem>>, vector<8x32xf32>
    %cst_11 = arith.constant dense<0xFF800000> : vector<8xf32>
    %23 = vector.multi_reduction <maximumf>, %22, %cst_11 [1] : vector<8x32xf32> to vector<8xf32>
    %24 = vector.shape_cast %23 : vector<8xf32> to vector<8x1xf32>
    %25 = vector.broadcast %24 : vector<8x1xf32> to vector<8x32xf32>
    %26 = arith.subf %22, %25 : vector<8x32xf32>
    %27 = math.exp %26 : vector<8x32xf32>
    %cst_12 = arith.constant dense<0.000000e+00> : vector<8xf32>
    %28 = vector.multi_reduction <add>, %27, %cst_12 [1] : vector<8x32xf32> to vector<8xf32>
    %29 = vector.shape_cast %28 : vector<8xf32> to vector<8x1xf32>
    %30 = math.log %29 : vector<8x1xf32>
    %31 = arith.mulf %30, %3 : vector<8x1xf32>
    %32 = arith.mulf %1, %26 : vector<8x32xf32>
    %cst_13 = arith.constant dense<0.000000e+00> : vector<8xf32>
    %33 = vector.multi_reduction <add>, %32, %cst_13 [1] : vector<8x32xf32> to vector<8xf32>
    %34 = vector.shape_cast %33 : vector<8xf32> to vector<8x1xf32>
    %35 = arith.subf %31, %34 : vector<8x1xf32>
    %36 = vector.shape_cast %35 : vector<8x1xf32> to vector<1x8x1xf32>
    %cst_14 = arith.constant dense<0.000000e+00> : vector<1xf32>
    %37 = vector.multi_reduction <add>, %36, %cst_14 [1, 2] : vector<1x8x1xf32> to vector<1xf32>
    %38 = vector.shape_cast %37 : vector<1xf32> to vector<1x1x1xf32>
    %39 = vector.extract %38[0, 0, 0] : f32 from vector<1x1x1xf32>
    %40 = arith.mulf %0, %21 : f32
    %cst_15 = arith.constant 1.000000e+00 : f32
    %41 = arith.subf %cst_15, %0 : f32
    %42 = arith.mulf %41, %39 : f32
    %43 = arith.addf %40, %42 : f32
    %44 = tpu.iota {dimensions = array<i32: 1>} : vector<1x8x128xi32>
    %45 = tpu.iota {dimensions = array<i32: 2>} : vector<1x8x128xi32>
    %c0_i32 = arith.constant 0 : i32
    %46 = vector.broadcast %c0_i32 : i32 to vector<1x8x128xi32>
    %47 = arith.cmpi eq, %44, %46 : vector<1x8x128xi32>
    %c0_i32_16 = arith.constant 0 : i32
    %48 = vector.broadcast %c0_i32_16 : i32 to vector<1x8x128xi32>
    %49 = arith.cmpi eq, %45, %48 : vector<1x8x128xi32>
    %50 = arith.andi %47, %49 : vector<1x8x128xi1>
    %cst_17 = arith.constant 0.000000e+00 : f32
    %51 = vector.broadcast %43 : f32 to vector<1x8x128xf32>
    %52 = vector.broadcast %cst_17 : f32 to vector<1x8x128xf32>
    %53 = arith.select %50, %51, %52 : vector<1x8x128xi1>, vector<1x8x128xf32>
    %c0_18 = arith.constant 0 : index
    %c0_19 = arith.constant 0 : index
    %c0_20 = arith.constant 0 : index
    %54 = vector.load %arg5[%c0_18, %c0_19, %c0_20] : memref<1x8x128xf32, #tpu.memory_space<vmem>>, vector<1x8x128xf32>
    tpu.vector_store %arg5[%c0_18, %c0_19, %c0_20], %53 {strides = array<i32>} : memref<1x8x128xf32, #tpu.memory_space<vmem>>, vector<1x8x128xf32>,
    return
  }
  func.func @transform_0(%arg0: i32) -> (i32, i32) {
    %c0_i32 = arith.constant 0 : i32
    %c0_i32_0 = arith.constant 0 : i32
    %c0_i32_1 = arith.constant 0 : i32
    return %c0_i32, %c0_i32_0 : i32, i32
  }
  func.func @transform_1(%arg0: i32) -> (i32, i32) {
    %c0_i32 = arith.constant 0 : i32
    %c0_i32_0 = arith.constant 0 : i32
    return %arg0, %c0_i32 : i32, i32
  }
  func.func @transform_2(%arg0: i32) -> (i32, i32) {
    %c0_i32 = arith.constant 0 : i32
    %c0_i32_0 = arith.constant 0 : i32
    return %arg0, %c0_i32 : i32, i32
  }
  func.func @transform_3(%arg0: i32) -> (i32, i32) {
    %c0_i32 = arith.constant 0 : i32
    %c0_i32_0 = arith.constant 0 : i32
    return %arg0, %c0_i32 : i32, i32
  }
  func.func @transform_4(%arg0: i32) -> (i32, i32, i32) {
    %c0_i32 = arith.constant 0 : i32
    %c0_i32_0 = arith.constant 0 : i32
    %c0_i32_1 = arith.constant 0 : i32
    return %arg0, %c0_i32, %c0_i32_0 : i32, i32, i32
  }
}

</mosaic_0001>

<llo_original>
// kernel: tpu_custom_call.1
$region0: #{tpu_custom_call.1}
  #allocation0 [shape = 'u32[]', space=smem, size = 0x4, offset = 0x4, fixed_abs, tag = 'smem constant byte address 0x4 - core index']
  #allocation1 [shape = 'u32[144,128]{1,0:T(1,128)}', space=vmem, size = 0x12000, scoped, tag = 'internal scratch']
  #allocation2 [shape = 'f32[1,1]{1,0:T(1,128)S(6)}', space=smem, size = 0x200, scoped, tag = 'scoped memory for tpu_custom_call.1']
  %s0 = inlined_call_operand.<no memory space> [shape: f32[1,1], index: 0, kind: input, shape index: {}]
  %s1 = inlined_call_operand.hbm [shape: f32[8,32], index: 1, kind: input, shape index: {}]
  %s2 = inlined_call_operand.hbm [shape: f32[8,32], index: 2, kind: input, shape index: {}]
  %s3 = inlined_call_operand.vmem [shape: f32[8,32], index: 3, kind: input, shape index: {}]
  %s4 = inlined_call_operand.hbm [shape: f32[1,8,128], index: 4, kind: output, shape index: {}]
  %s5 = sld [smem:[#allocation0]]
  $region34: #{tpu_custom_call.1} parent=0
    _
  %s7 = ssub.s32 1, %s5
  %s8 = scalar_select 0, %s7, %s5
  %9 = sst [smem:[#allocation2]] %s0
  $region1: #{tpu_custom_call.1} parent=0
    #allocation3 [shape = 'u8[4096]{0}', space=vmem, size = 0x1000, scoped, tag = 'input window, operand 1, single buffered']
    #allocation4 [shape = 's32[1]{0}', space=sflag, size = 0x4, scoped, tag = 'scoped memory for tpu_custom_call.1']
    #allocation5 [shape = 's32[1]{0}', space=sflag, size = 0x4, scoped, tag = 'scoped memory for tpu_custom_call.1']
    #allocation6 [shape = 'u8[4096]{0}', space=vmem, size = 0x1000, scoped, tag = 'input window, operand 2, single buffered']
    #allocation7 [shape = 's32[1]{0}', space=sflag, size = 0x4, scoped, tag = 'scoped memory for tpu_custom_call.1']
    #allocation8 [shape = 'u8[4096]{0}', space=vmem, size = 0x1000, scoped, tag = 'output window, operand 0, single buffered']
    %10 = vsyncpa [#allocation4], 0
    %11 = vsyncpa [#allocation7], 0
    %12 = vsyncpa [#allocation5], 0
    // Predicated region
    $region2: #{tpu_custom_call.1} parent=1 // pred_check
      _
    $region3: #{tpu_custom_call.1} parent=1 // pred_check_branch
      %14 = sbr.rel (0) target = $region5
    $region4: #{tpu_custom_call.1} parent=1 // pred_region
      _
    $region5: #{tpu_custom_call.1} parent=1 // pred_fallthru
      _
    // Predicated region
    $region6: #{tpu_custom_call.1} parent=1 // pred_check
      _
    $region7: #{tpu_custom_call.1} parent=1 // pred_check_branch
      %16 = sbr.rel (0) target = $region9
    $region8: #{tpu_custom_call.1} parent=1 // pred_region
      %s18 = ssub.s32 128, 128
      %19 = vsyncadd [#allocation4], %s18
      %s21 = sshll.u32 [#allocation3], 4
      %s22 = int_to_ptr.vmem [resolvable:$true] %s21
      %24 = dma.hbm_to_vmem [thread:$0]  %s1, 128, %s22, [#allocation4]
    $region9: #{tpu_custom_call.1} parent=1 // pred_fallthru
      _
    // Predicated region
    $region10: #{tpu_custom_call.1} parent=1 // pred_check
      _
    $region11: #{tpu_custom_call.1} parent=1 // pred_check_branch
      %26 = sbr.rel (0) target = $region13
    $region12: #{tpu_custom_call.1} parent=1 // pred_region
      %s28 = ssub.s32 128, 128
      %29 = vsyncadd [#allocation7], %s28
      %s31 = sshll.u32 [#allocation6], 4
      %s32 = int_to_ptr.vmem [resolvable:$true] %s31
      %34 = dma.hbm_to_vmem [thread:$0]  %s2, 128, %s32, [#allocation7]
    $region13: #{tpu_custom_call.1} parent=1 // pred_fallthru
      _
    // Predicated region
    $region14: #{tpu_custom_call.1} parent=1 // pred_check
      _
    $region15: #{tpu_custom_call.1} parent=1 // pred_check_branch
      %36 = sbr.rel (0) target = $region17
    $region16: #{tpu_custom_call.1} parent=1 // pred_region
      _
    $region17: #{tpu_custom_call.1} parent=1 // pred_fallthru
      _
    // Predicated region
    $region18: #{tpu_custom_call.1} parent=1 // pred_check
      _
    $region19: #{tpu_custom_call.1} parent=1 // pred_check_branch
      %38 = sbr.rel (0) target = $region21
    $region20: #{tpu_custom_call.1} parent=1 // pred_region
      %39 = dma.done [#allocation4], 128
    $region21: #{tpu_custom_call.1} parent=1 // pred_fallthru
      _
    // Predicated region
    $region22: #{tpu_custom_call.1} parent=1 // pred_check
      _
    $region23: #{tpu_custom_call.1} parent=1 // pred_check_branch
      %41 = sbr.rel (0) target = $region25
    $region24: #{tpu_custom_call.1} parent=1 // pred_region
      %42 = dma.done [#allocation7], 128
    $region25: #{tpu_custom_call.1} parent=1 // pred_fallthru
      _
    %s43 = sld [smem:[#allocation2]]
    %v44 = vld [vmem:[%s3] sm:$0xff]
    %vm45 = vcmask 261120
    %v46 = vsel %vm45, %v44, 0.0
    %47 = vadd.xlane.f32.xlu0 %v46
    %v48 = vpop.xlane.xlu0 %47
    %v49 = vld [vmem:[#allocation3] sm:$0xff]
    %v50 = vsel %vm45, %v49, -inf
    %51 = vmax.xlane.f32.xlu0 %v50
    %v52 = vpop.xlane.xlu0 %51
    %v53 = vsub.f32 %v49, %v52
    %v54 = vmul.f32 %v53, 1.442695
    %v55 = vpow.pop %v54
    %v56 = vsel %vm45, %v55, 0.0
    %57 = vadd.xlane.f32.xlu0 %v56
    %v58 = vpop.xlane.xlu0 %57
    %v59 = vlog2.pop %v58
    %v60 = vmul.f32 %v59, 0.6931472
    %v61 = vmul.f32 %v60, %v48
    %v62 = vmul.f32 %v44, %v53
    %v63 = vsel %vm45, %v62, 0.0
    %64 = vadd.xlane.f32.xlu0 %v63
    %v65 = vpop.xlane.xlu0 %64
    %v66 = vsub.f32 %v61, %v65
    %vm67 = vcmask 7168
    %v68 = vsel %vm67, %v66, 0.0
    %69 = vadd.xlane.f32.xlu0 %v68
    %v70 = vpop.xlane.xlu0 %69
    %v71 = vrot.slane %v70, 4
    %v72 = vadd.f32 %v70, %v71
    %v73 = vrot.slane %v72, 2
    %v74 = vadd.f32 %v72, %v73
    %v75 = vrot.slane %v74, 1
    %v76 = vadd.f32 %v74, %v75
    %s77 = vtos %v76
    %v78 = vld [vmem:[#allocation6] sm:$0xff]
    %v79 = vsel %vm45, %v78, -inf
    %80 = vmax.xlane.f32.xlu0 %v79
    %v81 = vpop.xlane.xlu0 %80
    %v82 = vsub.f32 %v78, %v81
    %v83 = vmul.f32 %v82, 1.442695
    %v84 = vpow.pop %v83
    %v85 = vsel %vm45, %v84, 0.0
    %86 = vadd.xlane.f32.xlu0 %v85
    %v87 = vpop.xlane.xlu0 %86
    %v88 = vlog2.pop %v87
    %v89 = vmul.f32 %v88, 0.6931472
    %v90 = vmul.f32 %v89, %v48
    %v91 = vmul.f32 %v44, %v82
    %v92 = vsel %vm45, %v91, 0.0
    %93 = vadd.xlane.f32.xlu0 %v92
    %v94 = vpop.xlane.xlu0 %93
    %v95 = vsub.f32 %v90, %v94
    %v96 = vsel %vm67, %v95, 0.0
    %97 = vadd.xlane.f32.xlu0 %v96
    %v98 = vpop.xlane.xlu0 %97
    %v99 = vrot.slane %v98, 4
    %v100 = vadd.f32 %v98, %v99
    %v101 = vrot.slane %v100, 2
    %v102 = vadd.f32 %v100, %v101
    %v103 = vrot.slane %v102, 1
    %v104 = vadd.f32 %v102, %v103
    %s105 = vtos %v104
    %s106 = smul.f32 %s43, %s77
    %s107 = ssub.f32 1.0, %s43
    %s108 = smul.f32 %s107, %s105
    %s109 = sadd.f32 %s106, %s108
    %v110 = vlaneseq
    %v111 = vshrl.u32 %v110, 7
    %v112 = vlaneseq
    %v113 = vand.u32 %v112, 127
    %vm114 = vcmp.eq.s32.totalorder %v111, 0
    %vm115 = vcmp.eq.s32.totalorder %v113, 0
    %vm116 = vmand %vm114, %vm115
    %v117 = vstv %s109
    %v118 = vsel %vm116, %v117, 0.0
    %119 = vst [vmem:[#allocation8] sm:$0xff] %v118
    // Predicated region
    $region26: #{tpu_custom_call.1} parent=1 // pred_check
      _
    $region27: #{tpu_custom_call.1} parent=1 // pred_check_branch
      %121 = sbr.rel (0) target = $region29
    $region28: #{tpu_custom_call.1} parent=1 // pred_region
      %s123 = ssub.s32 128, 128
      %124 = vsyncadd [#allocation5], %s123
      %s126 = sshll.u32 [#allocation8], 4
      %s127 = int_to_ptr.vmem [resolvable:$true] %s126
      %129 = dma.vmem_to_hbm [thread:$0]  %s127, 128, %s4, [#allocation5]
    $region29: #{tpu_custom_call.1} parent=1 // pred_fallthru
      _
    // Predicated region
    $region30: #{tpu_custom_call.1} parent=1 // pred_check
      _
    $region31: #{tpu_custom_call.1} parent=1 // pred_check_branch
      %131 = sbr.rel (0) target = $region33
    $region32: #{tpu_custom_call.1} parent=1 // pred_region
      %132 = dma.done [#allocation5], 128
    $region33: #{tpu_custom_call.1} parent=1 // pred_fallthru
      _
    %133 = vsyncpa [#allocation4], 1
    %134 = vsyncpa [#allocation7], 1
    %135 = vsyncpa [#allocation5], 1

</llo_original>
